<compile_context>
chip_gen: v7x
topology: tpu7x:2x2x1
jax: 0.10.0
libtpu: 0.0.40
codegen_flags: <defaults>
</compile_context>

<pallas_src>
import math
import functools

import numpy as np
import jax
import jax.numpy as jnp
from jax.experimental import pallas as pl
from jax.experimental.pallas import tpu as pltpu


# ----------------------------------------------------------------------------
# Bilinear interpolation matrix (PyTorch align_corners=False, half-pixel,
# recompute_scale_factor=None semantics: out = floor(in * s), src uses 1/s).
# Built with numpy at trace time -> baked as constants, no device-side setup ops.
# Rows sum to exactly 1, so the conv bias commutes through the resize.
# ----------------------------------------------------------------------------
def _bilinear_matrix_np(in_size: int, out_size: int, scale: float) -> np.ndarray:
    o = np.arange(out_size, dtype=np.float64)
    src = (o + 0.5) / float(scale) - 0.5
    src = np.maximum(src, 0.0)                      # torch clamps negatives to 0
    i0 = np.minimum(np.floor(src).astype(np.int64), in_size - 1)
    i1 = np.minimum(i0 + 1, in_size - 1)
    frac = src - i0.astype(np.float64)
    w = np.zeros((out_size, in_size), dtype=np.float64)
    w[np.arange(out_size), i0] += 1.0 - frac
    w[np.arange(out_size), i1] += frac
    return w.astype(np.float32)                     # (out_size, in_size)


# ----------------------------------------------------------------------------
# Pallas kernels
# ----------------------------------------------------------------------------
def _fused_kron_kernel(x_ref, w_ref, b_ref, rt_ref, o_ref, *, conv_first):
    # x_ref : (Nb, Cin, Pin)   lane-dense flattened spatial
    # w_ref : (Cout, Cin), b_ref: (Cout, 1)
    # rt_ref: (Pin, Pout)      kron(height, width) bilinear operator, transposed
    # o_ref : (Nb, Cout, Pout) lane-dense flattened spatial
    x = x_ref[...].astype(jnp.float32)
    nb, cin, _ = x.shape
    w = w_ref[...].astype(jnp.float32)
    cout = w.shape[0]
    rt = rt_ref[...]
    wb = jnp.broadcast_to(w[None], (nb, cout, cin))   # tiny (Cout*Cin floats), once per step
    if conv_first:
        # 1x1 conv in VMEM (tiny), then one big lane-dense resize matmul (M = Nb*Cout)
        y = jnp.einsum('noc,ncp->nop', wb, x, preferred_element_type=jnp.float32)
        z = jnp.einsum('nop,pq->noq', y, rt, preferred_element_type=jnp.float32)
    else:
        # resize first (M = Nb*Cin), then the tiny 1x1 conv on the resized tensor
        t = jnp.einsum('ncp,pq->ncq', x, rt, preferred_element_type=jnp.float32)
        z = jnp.einsum('noc,ncq->noq', wb, t, preferred_element_type=jnp.float32)
    o_ref[...] = (z + b_ref[...][None, :, :]).astype(o_ref.dtype)


def _kron_resize_kernel(x_ref, rt_ref, o_ref):
    # x_ref: (Nb, C, Pin), rt_ref: (Pin, Pout), o_ref: (Nb, C, Pout)
    x = x_ref[...].astype(jnp.float32)
    z = jnp.einsum('ncp,pq->ncq', x, rt_ref[...], preferred_element_type=jnp.float32)
    o_ref[...] = z.astype(o_ref.dtype)


def _conv1x1_kernel(x_ref, w_ref, b_ref, o_ref):
    # x_ref: (Nb, Cin, P), w_ref: (Cout, Cin), b_ref: (Cout, 1), o_ref: (Nb, Cout, P)
    x = x_ref[...].astype(jnp.float32)
    nb, cin, _ = x.shape
    w = w_ref[...].astype(jnp.float32)
    wb = jnp.broadcast_to(w[None], (nb, w.shape[0], cin))
    y = jnp.einsum('noc,ncp->nop', wb, x, preferred_element_type=jnp.float32)
    o_ref[...] = (y + b_ref[...][None, :, :]).astype(o_ref.dtype)


def _fused_sep_kernel(x_ref, w_ref, b_ref, wh_ref, wwt_ref, o_ref, *, conv_first):
    # Fallback for large maps (no quadratic Kronecker matrix).
    # x_ref: (Nb, Cin, Hin, Win), wh_ref: (Hout, Hin), wwt_ref: (Win, Wout)
    x = x_ref[...].astype(jnp.float32)
    nb, cin = x.shape[0], x.shape[1]
    w = w_ref[...].astype(jnp.float32)
    cout = w.shape[0]
    wb = jnp.broadcast_to(w[None], (nb, cout, cin))

    def resize(t):
        t = jnp.einsum('nchw,wk->nchk', t, wwt_ref[...], preferred_element_type=jnp.float32)
        return jnp.einsum('nchk,Hh->ncHk', t, wh_ref[...], preferred_element_type=jnp.float32)

    if conv_first:
        z = resize(jnp.einsum('noc,nchw->nohw', wb, x, preferred_element_type=jnp.float32))
    else:
        z = jnp.einsum('noc,nchw->nohw', wb, resize(x), preferred_element_type=jnp.float32)
    o_ref[...] = (z + b_ref[...][None, :, None, :]).astype(o_ref.dtype)


# ----------------------------------------------------------------------------
# Wrappers (only free reshapes outside the kernels — no transposes, no pads)
# ----------------------------------------------------------------------------
_COMPILER_PARAMS = pltpu.CompilerParams(
    dimension_semantics=("parallel",),
    vmem_limit_bytes=32 * 1024 * 1024,   # safe on v5e/v6e/v7x; blocks here are <= a few MiB
)

# R^T (Pin x Pout) f32 byte budget; keeps double-buffered blocks well under the
# scoped VMEM limit on every generation (v7x has only 64 MiB physical VMEM).
_KRON_BYTES_LIMIT = 4 * 1024 * 1024


def _choose_nb(n, cin, cout, pin, pout):
    """Batch elements per grid step: raise the MXU M dim toward ~128 rows while
    keeping >= 2 grid steps (v7x megacore) and bounding per-step VMEM."""
    target = max(1, 128 // max(cout, 1))
    if n >= 2:
        target = min(target, max(1, n // 2))
    per = 4 * (cin * pin + cout * pout + max(cin, cout) * max(pin, pout))
    target = min(target, max(1, (6 * 1024 * 1024) // max(per, 1)))
    nb = 1
    for d in range(1, n + 1):
        if n % d == 0 and d <= target:
            nb = d
    return nb


def _fused_conv_resize(x, weight, bias, scale_factor):
    n, cin, hin, win = x.shape
    cout = weight.shape[0]
    hout = int(math.floor(hin * scale_factor))
    wout = int(math.floor(win * scale_factor))
    pin, pout = hin * win, hout * wout
    conv_first = cout <= cin            # keep the big resize matmul on the narrower channel count
    w = weight.astype(jnp.float32)
    b = bias.reshape(cout, 1).astype(jnp.float32)
    wh = _bilinear_matrix_np(hin, hout, scale_factor)   # (Hout, Hin)
    ww = _bilinear_matrix_np(win, wout, scale_factor)   # (Wout, Win)

    if pin * pout * 4 <= _KRON_BYTES_LIMIT:
        rt = jnp.asarray(np.kron(wh, ww).T)             # (Pin, Pout) constant
        nb = _choose_nb(n, cin, cout, pin, pout)
        y = pl.pallas_call(
            functools.partial(_fused_kron_kernel, conv_first=conv_first),
            out_shape=jax.ShapeDtypeStruct((n, cout, pout), x.dtype),
            grid=(n // nb,),
            in_specs=[
                pl.BlockSpec((nb, cin, pin), lambda i: (i, 0, 0)),
                pl.BlockSpec((cout, cin), lambda i: (0, 0)),
                pl.BlockSpec((cout, 1), lambda i: (0, 0)),
                pl.BlockSpec((pin, pout), lambda i: (0, 0)),
            ],
            out_specs=pl.BlockSpec((nb, cout, pout), lambda i: (i, 0, 0)),
            compiler_params=_COMPILER_PARAMS,
        )(x.reshape(n, cin, pin), w, b, rt)
        return y.reshape(n, cout, hout, wout)

    # Large feature maps: separable (width/height pass) fused kernel, no kron matrix.
    # TODO(synk): spatially tile this path for feature maps that do not fit VMEM whole.
    nb = _choose_nb(n, cin, cout, pin, pout)
    return pl.pallas_call(
        functools.partial(_fused_sep_kernel, conv_first=conv_first),
        out_shape=jax.ShapeDtypeStruct((n, cout, hout, wout), x.dtype),
        grid=(n // nb,),
        in_specs=[
            pl.BlockSpec((nb, cin, hin, win), lambda i: (i, 0, 0, 0)),
            pl.BlockSpec((cout, cin), lambda i: (0, 0)),
            pl.BlockSpec((cout, 1), lambda i: (0, 0)),
            pl.BlockSpec((hout, hin), lambda i: (0, 0)),
            pl.BlockSpec((win, wout), lambda i: (0, 0)),
        ],
        out_specs=pl.BlockSpec((nb, cout, hout, wout), lambda i: (i, 0, 0, 0)),
        compiler_params=_COMPILER_PARAMS,
    )(x, w, b, jnp.asarray(wh), jnp.asarray(ww.T))


def _resize_pallas(x, scale_factor):
    n, c, hin, win = x.shape
    hout = int(math.floor(hin * scale_factor))
    wout = int(math.floor(win * scale_factor))
    pin, pout = hin * win, hout * wout
    if pin * pout * 4 <= _KRON_BYTES_LIMIT:
        wh = _bilinear_matrix_np(hin, hout, scale_factor)
        ww = _bilinear_matrix_np(win, wout, scale_factor)
        rt = jnp.asarray(np.kron(wh, ww).T)
        nb = _choose_nb(n, c, c, pin, pout)
        y = pl.pallas_call(
            _kron_resize_kernel,
            out_shape=jax.ShapeDtypeStruct((n, c, pout), x.dtype),
            grid=(n // nb,),
            in_specs=[
                pl.BlockSpec((nb, c, pin), lambda i: (i, 0, 0)),
                pl.BlockSpec((pin, pout), lambda i: (0, 0)),
            ],
            out_specs=pl.BlockSpec((nb, c, pout), lambda i: (i, 0, 0)),
            compiler_params=_COMPILER_PARAMS,
        )(x.reshape(n, c, pin), rt)
        return y.reshape(n, c, hout, wout)
    # Large maps: route through the separable fused kernel with an identity 1x1 conv
    # (the identity matmul is negligible next to the resize).
    return _fused_conv_resize(x, jnp.eye(c, dtype=jnp.float32),
                              jnp.zeros((c,), dtype=jnp.float32), scale_factor)


def _conv1x1_pallas(x, weight, bias):
    n, cin, h, w_ = x.shape
    cout = weight.shape[0]
    p = h * w_
    nb = _choose_nb(n, cin, cout, p, p)
    y = pl.pallas_call(
        _conv1x1_kernel,
        out_shape=jax.ShapeDtypeStruct((n, cout, p), x.dtype),
        grid=(n // nb,),
        in_specs=[
            pl.BlockSpec((nb, cin, p), lambda i: (i, 0, 0)),
            pl.BlockSpec((cout, cin), lambda i: (0, 0)),
            pl.BlockSpec((cout, 1), lambda i: (0, 0)),
        ],
        out_specs=pl.BlockSpec((nb, cout, p), lambda i: (i, 0, 0)),
        compiler_params=_COMPILER_PARAMS,
    )(x.reshape(n, cin, p), weight.astype(jnp.float32),
      bias.reshape(cout, 1).astype(jnp.float32))
    return y.reshape(n, cout, h, w_)


def transition_block(x, params, scale_factor):
    """Forward pass of TransitionBlock. x: NCHW."""
    do_resize = scale_factor != 1
    needs_conv = params is not None
    if do_resize and needs_conv:
        return _fused_conv_resize(x, params["weight"], params["bias"], scale_factor)
    if do_resize:
        return _resize_pallas(x, scale_factor)
    if needs_conv:
        return _conv1x1_pallas(x, params["weight"], params["bias"])
    return x


# ----------------------------------------------------------------------------
# Pure-JAX reference in the ORIGINAL op order (resize -> conv), using a direct
# 2-tap gather+lerp bilinear (independent of the interpolation-matrix path).
# ----------------------------------------------------------------------------
def _ref_resize(x, scale):
    N, C, H, W = x.shape
    Ho = int(math.floor(H * scale))
    Wo = int(math.floor(W * scale))

    def taps(out_size, in_size):
        s = (jnp.arange(out_size, dtype=jnp.float32) + 0.5) / float(scale) - 0.5
        s = jnp.maximum(s, 0.0)
        i0 = jnp.minimum(jnp.floor(s).astype(jnp.int32), in_size - 1)
        i1 = jnp.minimum(i0 + 1, in_size - 1)
        f = s - i0.astype(jnp.float32)
        return i0, i1, f

    h0, h1, fh = taps(Ho, H)
    w0, w1, fw = taps(Wo, W)
    xh = (x[:, :, h0, :] * (1.0 - fh)[None, None, :, None]
          + x[:, :, h1, :] * fh[None, None, :, None])
    return (xh[:, :, :, w0] * (1.0 - fw)[None, None, None, :]
            + xh[:, :, :, w1] * fw[None, None, None, :])


def _reference(x, params, scale_factor):
    if scale_factor != 1:
        x = _ref_resize(x, scale_factor)
    if params is not None:
        x = (jnp.einsum('oc,nchw->nohw', params["weight"], x, precision='highest')
             + params["bias"][None, :, None, None])
    return x


if __name__ == "__main__":
    # Module config: in_channels=4, out_channels=8, scale_factor=2.0 (needs_conv=True)
    in_channels, out_channels, scale_factor = 4, 8, 2.0

    key = jax.random.PRNGKey(0)
    kx, kw, kb = jax.random.split(key, 3)
    x = jax.random.normal(kx, (2, in_channels, 16, 16), dtype=jnp.float32)

    # Deterministic synthetic parameters for the 1x1 conv (Conv2d(in, out, 1)).
    params = {
        "weight": jax.random.normal(kw, (out_channels, in_channels), dtype=jnp.float32) * 0.1,
        "bias": jax.random.normal(kb, (out_channels,), dtype=jnp.float32) * 0.1,
    }

    fwd = jax.jit(functools.partial(transition_block, scale_factor=scale_factor))
    y = fwd(x, params)
    jax.block_until_ready(y)

    y_ref = _reference(x, params, scale_factor)
    assert y.shape == (2, out_channels, 32, 32), y.shape
    max_err = float(jnp.max(jnp.abs(y - y_ref)))
    assert jnp.allclose(y, y_ref, rtol=1e-4, atol=1e-4), max_err

    print("KERNEL_OK")
</pallas_src>

<mosaic_0001>
module attributes {stable_mosaic.version = 11 : i64} {
  func.func @_fused_kron_kernel(%arg0: i32, %arg1: memref<1x4x256xf32, #tpu.memory_space<vmem>>, %arg2: memref<8x4xf32, #tpu.memory_space<vmem>>, %arg3: memref<8x1xf32, #tpu.memory_space<vmem>>, %arg4: memref<256x1024xf32, #tpu.memory_space<vmem>>, %arg5: memref<1x8x1024xf32, #tpu.memory_space<vmem>>) attributes {dimension_semantics = [#tpu.dimension_semantics<parallel>], iteration_bounds = array<i64: 2>, scalar_prefetch = 0 : i64, scratch_operands = 0 : i64, tpu.core_type = #tpu.core_type<tc>, window_params = [{transform_indices = @transform_0, window_bounds = array<i64: 1, 4, 256>}, {pipeline_mode = #tpu.pipeline_mode<synchronous>, transform_indices = @transform_1, window_bounds = array<i64: 8, 4>}, {pipeline_mode = #tpu.pipeline_mode<synchronous>, transform_indices = @transform_2, window_bounds = array<i64: 8, 1>}, {pipeline_mode = #tpu.pipeline_mode<synchronous>, transform_indices = @transform_3, window_bounds = array<i64: 256, 1024>}, {transform_indices = @transform_4, window_bounds = array<i64: 1, 8, 1024>}]} {
    %c0 = arith.constant 0 : index
    %c0_0 = arith.constant 0 : index
    %c0_1 = arith.constant 0 : index
    %0 = vector.load %arg1[%c0, %c0_0, %c0_1] : memref<1x4x256xf32, #tpu.memory_space<vmem>>, vector<1x4x256xf32>
    %c0_2 = arith.constant 0 : index
    %c0_3 = arith.constant 0 : index
    %1 = vector.load %arg2[%c0_2, %c0_3] : memref<8x4xf32, #tpu.memory_space<vmem>>, vector<8x4xf32>
    %c0_4 = arith.constant 0 : index
    %c0_5 = arith.constant 0 : index
    %2 = vector.load %arg4[%c0_4, %c0_5] : memref<256x1024xf32, #tpu.memory_space<vmem>>, vector<256x1024xf32>
    %3 = vector.shape_cast %1 : vector<8x4xf32> to vector<1x8x4xf32>
    "tpu.trace_start"() <{level = 10 : i32, message = "ncp,pq->ncq"}> : () -> ()
    %cst = arith.constant dense<0.000000e+00> : vector<1x4x1024xf32>
    %4 = tpu.matmul %0, %2, %cst {dimension_numbers = #tpu.dot_dimension_numbers<[2], [0], [0, 1], [1], [0, 0, 0, 1, 1, 1], [], []>} : vector<1x4x256xf32>, vector<256x1024xf32>, vector<1x4x1024xf32> -> vector<1x4x1024xf32>
    "tpu.trace_stop"() : () -> ()
    "tpu.trace_start"() <{level = 10 : i32, message = "noc,ncq->noq"}> : () -> ()
    %cst_6 = arith.constant dense<0.000000e+00> : vector<1x8x1024xf32>
    %5 = tpu.matmul %3, %4, %cst_6 {dimension_numbers = #tpu.dot_dimension_numbers<[2], [1], [1], [2], [0, 0, 0, 1, 1, 2], [0], [0]>} : vector<1x8x4xf32>, vector<1x4x1024xf32>, vector<1x8x1024xf32> -> vector<1x8x1024xf32>
    "tpu.trace_stop"() : () -> ()
    %c0_7 = arith.constant 0 : index
    %c0_8 = arith.constant 0 : index
    %6 = vector.load %arg3[%c0_7, %c0_8] : memref<8x1xf32, #tpu.memory_space<vmem>>, vector<8x1xf32>
    %7 = vector.shape_cast %6 : vector<8x1xf32> to vector<1x8x1xf32>
    %8 = vector.broadcast %7 : vector<1x8x1xf32> to vector<1x8x1024xf32>
    %9 = arith.addf %5, %8 : vector<1x8x1024xf32>
    %c0_9 = arith.constant 0 : index
    %c0_10 = arith.constant 0 : index
    %c0_11 = arith.constant 0 : index
    %10 = vector.load %arg5[%c0_9, %c0_10, %c0_11] : memref<1x8x1024xf32, #tpu.memory_space<vmem>>, vector<1x8x1024xf32>
    tpu.vector_store %arg5[%c0_9, %c0_10, %c0_11], %9 {strides = array<i32>} : memref<1x8x1024xf32, #tpu.memory_space<vmem>>, vector<1x8x1024xf32>,
    return
  }
  func.func @transform_0(%arg0: i32) -> (i32, i32, i32) {
    %c0_i32 = arith.constant 0 : i32
    %c0_i32_0 = arith.constant 0 : i32
    %c0_i32_1 = arith.constant 0 : i32
    return %arg0, %c0_i32, %c0_i32_0 : i32, i32, i32
  }
  func.func @transform_1(%arg0: i32) -> (i32, i32) {
    %c0_i32 = arith.constant 0 : i32
    %c0_i32_0 = arith.constant 0 : i32
    %c0_i32_1 = arith.constant 0 : i32
    return %c0_i32, %c0_i32_0 : i32, i32
  }
  func.func @transform_2(%arg0: i32) -> (i32, i32) {
    %c0_i32 = arith.constant 0 : i32
    %c0_i32_0 = arith.constant 0 : i32
    %c0_i32_1 = arith.constant 0 : i32
    return %c0_i32, %c0_i32_0 : i32, i32
  }
  func.func @transform_3(%arg0: i32) -> (i32, i32) {
    %c0_i32 = arith.constant 0 : i32
    %c0_i32_0 = arith.constant 0 : i32
    %c0_i32_1 = arith.constant 0 : i32
    return %c0_i32, %c0_i32_0 : i32, i32
  }
  func.func @transform_4(%arg0: i32) -> (i32, i32, i32) {
    %c0_i32 = arith.constant 0 : i32
    %c0_i32_0 = arith.constant 0 : i32
    %c0_i32_1 = arith.constant 0 : i32
    return %arg0, %c0_i32, %c0_i32_0 : i32, i32, i32
  }
}

</mosaic_0001>

<llo_original>
// kernel: transition_block.1
$region0: #{transition_block.1}
  #allocation0 [shape = 'u32[]', space=smem, size = 0x4, offset = 0x4, fixed_abs, tag = 'smem constant byte address 0x4 - core index']
  #allocation1 [shape = 'u32[144,128]{1,0:T(1,128)}', space=vmem, size = 0x12000, scoped, tag = 'internal scratch']
  %s0 = inlined_call_operand.vmem [shape: f32[2,4,256], index: 0, kind: input, shape index: {}]
  %s1 = inlined_call_operand.vmem [shape: f32[8,4], index: 1, kind: input, shape index: {}]
  %s2 = inlined_call_operand.vmem [shape: f32[8,1], index: 2, kind: input, shape index: {}]
  %s3 = inlined_call_operand.hbm [shape: f32[256,1024], index: 3, kind: input, shape index: {}]
  %s4 = inlined_call_operand.vmem [shape: f32[2,8,1024], index: 4, kind: output, shape index: {}]
  %s5 = sld [smem:[#allocation0]]
  $region53: #{transition_block.1} parent=0
    _
  %s7 = ssub.s32 1, %s5
  %s8 = scalar_select 0, %s7, %s5
  $region1: #{transition_block.1} parent=0
    #allocation2 [shape = 'u8[1048576]{0}', space=vmem, size = 0x100000, scoped, tag = 'input window, operand 3, single buffered']
    #allocation3 [shape = 's32[2]{0}', space=sflag, size = 0x8, scoped, tag = 'scoped memory for transition_block.1']
    %9 = vsyncpa [#allocation3], 0
    loop: start=0, step=1, limit=4
    $region2: #{transition_block.1} parent=1 // loop_pre_header
      _
    $region3: #{transition_block.1} parent=1 // loop_header
      %s11 = sphi 0, %s15
      %p12 = scmp.ge.s32.totalorder %s11, 4
      %s21 = sphi 0, %s23
      %s24 = sphi 0, %s21
      %s25 = sphi 0, %s24
      %s41 = sphi 0, %s25
      %s45 = sphi 0, %s45
      %s47 = sphi 0, %s45
      %s48 = sphi 0, %s47
      %s62 = sphi 0, %s48
      %s66 = sphi 0, %s66
      %s68 = sphi 0, %s66
      %s69 = sphi 0, %s68
      %s83 = sphi 0, %s69
      %s87 = sphi 0, %s87
      %s89 = sphi 0, %s87
      %s90 = sphi 0, %s89
      %s104 = sphi 0, %s90
      %s110 = sphi 0, %s112
      %s113 = sphi 0, %s110
      %s114 = sphi 0, %s113
      %s130 = sphi 0, %s114
    $region4: #{transition_block.1} parent=1 // loop_header_branch
      %14 = sbr.rel (%p12) target = $region8
    $region5: #{transition_block.1} parent=1 // loop_body
      %s16 = ssub.s32 %s11, 1
      %s17 = ssub.s32 %s11, 2
      %s18 = sadd.s32 %s11, 1
      %s19 = ssub.s32 %s11, %s18
      %p20 = scmp.eq.s32.totalorder %s19, 0
      %s22 = sadd.s32 %s21, 1
      %s23 = scalar_select %p20, %s21, %s22
      %p26 = pneg %p20
      %p27 = scmp.eq.s32.totalorder %s11, 1
      %p28 = por %p26, %p27
      %p29 = scmp.ne.s32.totalorder %s21, %s24
      %p30 = scmp.eq.s32.totalorder %s11, 0
      %p31 = por %p29, %p30
      %p32 = scmp.ne.s32.totalorder %s21, %s24
      %p33 = scmp.eq.s32.totalorder %s16, 1
      %p34 = por %p32, %p33
      %p35 = scmp.ne.s32.totalorder %s24, %s25
      %p36 = scmp.eq.s32.totalorder %s16, 0
      %p37 = por %p35, %p36
      %p38 = scmp.ne.s32.totalorder %s24, %s25
      %p39 = scmp.eq.s32.totalorder %s17, 1
      %p40 = por %p38, %p39
      %p42 = scmp.ne.s32.totalorder %s25, %s41
      %p43 = scmp.eq.s32.totalorder %s17, 0
      %p44 = por %p42, %p43
      %s46 = sadd.s32 %s45, 1
      %p49 = scmp.eq.s32.totalorder %s11, 1
      %p50 = scmp.ne.s32.totalorder %s45, %s47
      %p51 = scmp.eq.s32.totalorder %s11, 0
      %p52 = por %p50, %p51
      %p53 = scmp.ne.s32.totalorder %s45, %s47
      %p54 = scmp.eq.s32.totalorder %s16, 1
      %p55 = por %p53, %p54
      %p56 = scmp.ne.s32.totalorder %s47, %s48
      %p57 = scmp.eq.s32.totalorder %s16, 0
      %p58 = por %p56, %p57
      %p59 = scmp.ne.s32.totalorder %s47, %s48
      %p60 = scmp.eq.s32.totalorder %s17, 1
      %p61 = por %p59, %p60
      %p63 = scmp.ne.s32.totalorder %s48, %s62
      %p64 = scmp.eq.s32.totalorder %s17, 0
      %p65 = por %p63, %p64
      %s67 = sadd.s32 %s66, 1
      %p70 = scmp.eq.s32.totalorder %s11, 1
      %p71 = scmp.ne.s32.totalorder %s66, %s68
      %p72 = scmp.eq.s32.totalorder %s11, 0
      %p73 = por %p71, %p72
      %p74 = scmp.ne.s32.totalorder %s66, %s68
      %p75 = scmp.eq.s32.totalorder %s16, 1
      %p76 = por %p74, %p75
      %p77 = scmp.ne.s32.totalorder %s68, %s69
      %p78 = scmp.eq.s32.totalorder %s16, 0
      %p79 = por %p77, %p78
      %p80 = scmp.ne.s32.totalorder %s68, %s69
      %p81 = scmp.eq.s32.totalorder %s17, 1
      %p82 = por %p80, %p81
      %p84 = scmp.ne.s32.totalorder %s69, %s83
      %p85 = scmp.eq.s32.totalorder %s17, 0
      %p86 = por %p84, %p85
      %s88 = sadd.s32 %s87, 1
      %p91 = scmp.eq.s32.totalorder %s11, 1
      %p92 = scmp.ne.s32.totalorder %s87, %s89
      %p93 = scmp.eq.s32.totalorder %s11, 0
      %p94 = por %p92, %p93
      %p95 = scmp.ne.s32.totalorder %s87, %s89
      %p96 = scmp.eq.s32.totalorder %s16, 1
      %p97 = por %p95, %p96
      %p98 = scmp.ne.s32.totalorder %s89, %s90
      %p99 = scmp.eq.s32.totalorder %s16, 0
      %p100 = por %p98, %p99
      %p101 = scmp.ne.s32.totalorder %s89, %s90
      %p102 = scmp.eq.s32.totalorder %s17, 1
      %p103 = por %p101, %p102
      %p105 = scmp.ne.s32.totalorder %s90, %s104
      %p106 = scmp.eq.s32.totalorder %s17, 0
      %p107 = por %p105, %p106
      %s108 = ssub.s32 %s11, %s18
      %p109 = scmp.eq.s32.totalorder %s108, 0
      %s111 = sadd.s32 %s110, 1
      %s112 = scalar_select %p109, %s110, %s111
      %p115 = pneg %p109
      %p116 = scmp.eq.s32.totalorder %s11, 1
      %p117 = por %p115, %p116
      %p118 = scmp.ne.s32.totalorder %s110, %s113
      %p119 = scmp.eq.s32.totalorder %s11, 0
      %p120 = por %p118, %p119
      %p121 = scmp.ne.s32.totalorder %s110, %s113
      %p122 = scmp.eq.s32.totalorder %s16, 1
      %p123 = por %p121, %p122
      %p124 = scmp.ne.s32.totalorder %s113, %s114
      %p125 = scmp.eq.s32.totalorder %s16, 0
      %p126 = por %p124, %p125
      %p127 = scmp.ne.s32.totalorder %s113, %s114
      %p128 = scmp.eq.s32.totalorder %s17, 1
      %p129 = por %p127, %p128
      %p131 = scmp.ne.s32.totalorder %s114, %s130
      %p132 = scmp.eq.s32.totalorder %s17, 0
      %p133 = por %p131, %p132
      %p134 = scmp.le.s32.totalorder 1, %s11
      %p135 = scmp.lt.s32.totalorder %s11, 3
      %p136 = pnand %p134, %p135
      %p137 = pneg %p136
      // Predicated region
      $region9: #{transition_block.1} parent=5 // pred_check
        _
      $region10: #{transition_block.1} parent=5 // pred_check_branch
        %139 = sbr.rel (%p136) target = $region12
      $region11: #{transition_block.1} parent=5 // pred_region
        %s140 = ssub.s32 %s11, 1
        // Predicated region
        $region13: #{transition_block.1} parent=11 // pred_check
          %p141 = pneg %p58
        $region14: #{transition_block.1} parent=11 // pred_check_branch
          %143 = sbr.rel (%p141) target = $region16
        $region15: #{transition_block.1} parent=11 // pred_region
          _
        $region16: #{transition_block.1} parent=11 // pred_fallthru
          _
        // Predicated region
        $region17: #{transition_block.1} parent=11 // pred_check
          %p144 = pneg %p79
        $region18: #{transition_block.1} parent=11 // pred_check_branch
          %146 = sbr.rel (%p144) target = $region20
        $region19: #{transition_block.1} parent=11 // pred_region
          _
        $region20: #{transition_block.1} parent=11 // pred_fallthru
          _
        // Predicated region
        $region21: #{transition_block.1} parent=11 // pred_check
          %p147 = pneg %p100
        $region22: #{transition_block.1} parent=11 // pred_check_branch
          %149 = sbr.rel (%p147) target = $region24
        $region23: #{transition_block.1} parent=11 // pred_region
          %s151 = ssub.s32 32768, 32768
          %152 = vsyncadd [#allocation3], %s151
          %s153 = sshll.u32 [#allocation2], 4
          %s154 = int_to_ptr.vmem [resolvable:$true] %s153
          %159 = dma.hbm_to_vmem [thread:$0]  %s3, 32768, %s154, [#allocation3], 1024, 1024, 64
        $region24: #{transition_block.1} parent=11 // pred_fallthru
          _
      $region12: #{transition_block.1} parent=5 // pred_fallthru
        _
      %p160 = scmp.lt.s32.totalorder %s11, 2
      // Predicated region
      $region25: #{transition_block.1} parent=5 // pred_check
        %p161 = pneg %p160
      $region26: #{transition_block.1} parent=5 // pred_check_branch
        %163 = sbr.rel (%p161) target = $region28
      $region27: #{transition_block.1} parent=5 // pred_region
        // Predicated region
        $region29: #{transition_block.1} parent=27 // pred_check
          %p164 = pneg %p31
        $region30: #{transition_block.1} parent=27 // pred_check_branch
          %166 = sbr.rel (%p164) target = $region32
        $region31: #{transition_block.1} parent=27 // pred_region
          %p167 = scmp.lt.s32.totalorder %s11, 1
          %s168 = scalar_select %p167, %s11, 1
          %s169 = smul.addr %s168, 2
          %s170 = smul.addr %s169, 4
          %s171 = scalar_lea.vmem %s0, %s170
        $region32: #{transition_block.1} parent=27 // pred_fallthru
          _
      $region28: #{transition_block.1} parent=5 // pred_fallthru
        _
      %p172 = scmp.le.s32.totalorder 1, %s11
      %p173 = scmp.lt.s32.totalorder %s11, 3
      %p174 = pnand %p172, %p173
      %p175 = pneg %p174
      // Predicated region
      $region33: #{transition_block.1} parent=5 // pred_check
        _
      $region34: #{transition_block.1} parent=5 // pred_check_branch
        %177 = sbr.rel (%p174) target = $region36
      $region35: #{transition_block.1} parent=5 // pred_region
        %s178 = ssub.s32 %s11, 1
        // Predicated region
        $region37: #{transition_block.1} parent=35 // pred_check
          %p179 = pneg %p100
        $region38: #{transition_block.1} parent=35 // pred_check_branch
          %181 = sbr.rel (%p179) target = $region40
        $region39: #{transition_block.1} parent=35 // pred_region
          %182 = dma.done [#allocation3], 32768
        $region40: #{transition_block.1} parent=35 // pred_fallthru
          _
        %p183 = scmp.lt.s32.totalorder %s16, 1
        %s184 = scalar_select %p183, %s16, 1
        %s185 = smul.addr %s184, 2
        %s186 = smul.addr %s185, 4
        %s187 = scalar_lea.vmem %s0, %s186
        %p188 = pneg %p37
        %p189 = pneg %p34
        %p190 = pneg %p58
        %p191 = pneg %p55
        %p192 = pneg %p79
        %p193 = pneg %p76
        %p194 = pneg %p100
        %p195 = pneg %p97
        %p196 = pneg %p126
        %p197 = pneg %p123
        %p198 = scmp.lt.s32.totalorder %s16, 1
        %s199 = scalar_select %p198, %s16, 1
        %s200 = smul.addr %s199, 8
        %s201 = smul.addr %s200, 8
        %s202 = scalar_lea.vmem %s4, %s201
        %p203 = scmp.lt.s32.totalorder %s16, 1
        %s204 = scalar_select %p203, %s16, 1
        %s205 = smul.addr %s204, 2
        %s206 = smul.addr %s205, 4
        %s207 = scalar_lea.vmem %s0, %s206
        %p208 = scmp.lt.s32.totalorder %s16, 1
        %s209 = scalar_select %p208, %s16, 1
        %s210 = smul.addr %s209, 8
        %s211 = smul.addr %s210, 8
        %s212 = scalar_lea.vmem %s4, %s211
        %v213 = vld [vmem:[%s207] sm:$0xff]
        %v214 = vld [vmem:[%s1] sm:$0xff]
        %v215 = vld [vmem:[#allocation2] sm:$0xff]
        %v216 = vld [vmem:[#allocation2 + $0x8] sm:$0xff]
        %v217 = vld [vmem:[#allocation2 + $0x10] sm:$0xff]
        %v218 = vld [vmem:[#allocation2 + $0x18] sm:$0xff]
        %v219 = vld [vmem:[#allocation2 + $0x20] sm:$0xff]
        %v220 = vld [vmem:[#allocation2 + $0x28] sm:$0xff]
        %v221 = vld [vmem:[#allocation2 + $0x30] sm:$0xff]
        %v222 = vld [vmem:[#allocation2 + $0x38] sm:$0xff]
        %v223 = vld [vmem:[#allocation2 + $0x40] sm:$0xff]
        %v224 = vld [vmem:[#allocation2 + $0x48] sm:$0xff]
        %v225 = vld [vmem:[#allocation2 + $0x50] sm:$0xff]
        %v226 = vld [vmem:[#allocation2 + $0x58] sm:$0xff]
        %v227 = vld [vmem:[#allocation2 + $0x60] sm:$0xff]
        %v228 = vld [vmem:[#allocation2 + $0x68] sm:$0xff]
        %v229 = vld [vmem:[#allocation2 + $0x70] sm:$0xff]
        %v230 = vld [vmem:[#allocation2 + $0x78] sm:$0xff]
        %v231 = vld [vmem:[#allocation2 + $0x80] sm:$0xff]
        %v232 = vld [vmem:[#allocation2 + $0x88] sm:$0xff]
        %v233 = vld [vmem:[#allocation2 + $0x90] sm:$0xff]
        %v234 = vld [vmem:[#allocation2 + $0x98] sm:$0xff]
        %v235 = vld [vmem:[#allocation2 + $0xa0] sm:$0xff]
        %v236 = vld [vmem:[#allocation2 + $0xa8] sm:$0xff]
        %v237 = vld [vmem:[#allocation2 + $0xb0] sm:$0xff]
        %v238 = vld [vmem:[#allocation2 + $0xb8] sm:$0xff]
        %v239 = vld [vmem:[#allocation2 + $0xc0] sm:$0xff]
        %v240 = vld [vmem:[#allocation2 + $0xc8] sm:$0xff]
        %v241 = vld [vmem:[#allocation2 + $0xd0] sm:$0xff]
        %v242 = vld [vmem:[#allocation2 + $0xd8] sm:$0xff]
        %v243 = vld [vmem:[#allocation2 + $0xe0] sm:$0xff]
        %v244 = vld [vmem:[#allocation2 + $0xe8] sm:$0xff]
        %v245 = vld [vmem:[#allocation2 + $0xf0] sm:$0xff]
        %v246 = vld [vmem:[#allocation2 + $0xf8] sm:$0xff]
        %v247 = vld [vmem:[#allocation2 + $0x100] sm:$0xff]
        %v248 = vld [vmem:[#allocation2 + $0x108] sm:$0xff]
        %v249 = vld [vmem:[#allocation2 + $0x110] sm:$0xff]
        %v250 = vld [vmem:[#allocation2 + $0x118] sm:$0xff]
        %v251 = vld [vmem:[#allocation2 + $0x120] sm:$0xff]
        %v252 = vld [vmem:[#allocation2 + $0x128] sm:$0xff]
        %v253 = vld [vmem:[#allocation2 + $0x130] sm:$0xff]
        %v254 = vld [vmem:[#allocation2 + $0x138] sm:$0xff]
        %v255 = vld [vmem:[#allocation2 + $0x140] sm:$0xff]
        %v256 = vld [vmem:[#allocation2 + $0x148] sm:$0xff]
        %v257 = vld [vmem:[#allocation2 + $0x150] sm:$0xff]
        %v258 = vld [vmem:[#allocation2 + $0x158] sm:$0xff]
        %v259 = vld [vmem:[#allocation2 + $0x160] sm:$0xff]
        %v260 = vld [vmem:[#allocation2 + $0x168] sm:$0xff]
        %v261 = vld [vmem:[#allocation2 + $0x170] sm:$0xff]
        %v262 = vld [vmem:[#allocation2 + $0x178] sm:$0xff]
        %v263 = vld [vmem:[#allocation2 + $0x180] sm:$0xff]
        %v264 = vld [vmem:[#allocation2 + $0x188] sm:$0xff]
        %v265 = vld [vmem:[#allocation2 + $0x190] sm:$0xff]
        %v266 = vld [vmem:[#allocation2 + $0x198] sm:$0xff]
        %v267 = vld [vmem:[#allocation2 + $0x1a0] sm:$0xff]
        %v268 = vld [vmem:[#allocation2 + $0x1a8] sm:$0xff]
        %v269 = vld [vmem:[#allocation2 + $0x1b0] sm:$0xff]
        %v270 = vld [vmem:[#allocation2 + $0x1b8] sm:$0xff]
        %v271 = vld [vmem:[#allocation2 + $0x1c0] sm:$0xff]
        %v272 = vld [vmem:[#allocation2 + $0x1c8] sm:$0xff]
        %v273 = vld [vmem:[#allocation2 + $0x1d0] sm:$0xff]
        %v274 = vld [vmem:[#allocation2 + $0x1d8] sm:$0xff]
        %v275 = vld [vmem:[#allocation2 + $0x1e0] sm:$0xff]
        %v276 = vld [vmem:[#allocation2 + $0x1e8] sm:$0xff]
        %v277 = vld [vmem:[#allocation2 + $0x1f0] sm:$0xff]
        %v278 = vld [vmem:[#allocation2 + $0x1f8] sm:$0xff]
        %v279 = vld [vmem:[#allocation2 + $0x200] sm:$0xff]
        %v280 = vld [vmem:[#allocation2 + $0x208] sm:$0xff]
        %v281 = vld [vmem:[#allocation2 + $0x210] sm:$0xff]
        %v282 = vld [vmem:[#allocation2 + $0x218] sm:$0xff]
        %v283 = vld [vmem:[#allocation2 + $0x220] sm:$0xff]
        %v284 = vld [vmem:[#allocation2 + $0x228] sm:$0xff]
        %v285 = vld [vmem:[#allocation2 + $0x230] sm:$0xff]
        %v286 = vld [vmem:[#allocation2 + $0x238] sm:$0xff]
        %v287 = vld [vmem:[#allocation2 + $0x240] sm:$0xff]
        %v288 = vld [vmem:[#allocation2 + $0x248] sm:$0xff]
        %v289 = vld [vmem:[#allocation2 + $0x250] sm:$0xff]
        %v290 = vld [vmem:[#allocation2 + $0x258] sm:$0xff]
        %v291 = vld [vmem:[#allocation2 + $0x260] sm:$0xff]
        %v292 = vld [vmem:[#allocation2 + $0x268] sm:$0xff]
        %v293 = vld [vmem:[#allocation2 + $0x270] sm:$0xff]
        %v294 = vld [vmem:[#allocation2 + $0x278] sm:$0xff]
        %v295 = vld [vmem:[#allocation2 + $0x280] sm:$0xff]
        %v296 = vld [vmem:[#allocation2 + $0x288] sm:$0xff]
        %v297 = vld [vmem:[#allocation2 + $0x290] sm:$0xff]
        %v298 = vld [vmem:[#allocation2 + $0x298] sm:$0xff]
        %v299 = vld [vmem:[#allocation2 + $0x2a0] sm:$0xff]
        %v300 = vld [vmem:[#allocation2 + $0x2a8] sm:$0xff]
        %v301 = vld [vmem:[#allocation2 + $0x2b0] sm:$0xff]
        %v302 = vld [vmem:[#allocation2 + $0x2b8] sm:$0xff]
        %v303 = vld [vmem:[#allocation2 + $0x2c0] sm:$0xff]
        %v304 = vld [vmem:[#allocation2 + $0x2c8] sm:$0xff]
        %v305 = vld [vmem:[#allocation2 + $0x2d0] sm:$0xff]
        %v306 = vld [vmem:[#allocation2 + $0x2d8] sm:$0xff]
        %v307 = vld [vmem:[#allocation2 + $0x2e0] sm:$0xff]
        %v308 = vld [vmem:[#allocation2 + $0x2e8] sm:$0xff]
        %v309 = vld [vmem:[#allocation2 + $0x2f0] sm:$0xff]
        %v310 = vld [vmem:[#allocation2 + $0x2f8] sm:$0xff]
        %v311 = vld [vmem:[#allocation2 + $0x300] sm:$0xff]
        %v312 = vld [vmem:[#allocation2 + $0x308] sm:$0xff]
        %v313 = vld [vmem:[#allocation2 + $0x310] sm:$0xff]
        %v314 = vld [vmem:[#allocation2 + $0x318] sm:$0xff]
        %v315 = vld [vmem:[#allocation2 + $0x320] sm:$0xff]
        %v316 = vld [vmem:[#allocation2 + $0x328] sm:$0xff]
        %v317 = vld [vmem:[#allocation2 + $0x330] sm:$0xff]
        %v318 = vld [vmem:[#allocation2 + $0x338] sm:$0xff]
        %v319 = vld [vmem:[#allocation2 + $0x340] sm:$0xff]
        %v320 = vld [vmem:[#allocation2 + $0x348] sm:$0xff]
        %v321 = vld [vmem:[#allocation2 + $0x350] sm:$0xff]
        %v322 = vld [vmem:[#allocation2 + $0x358] sm:$0xff]
        %v323 = vld [vmem:[#allocation2 + $0x360] sm:$0xff]
        %v324 = vld [vmem:[#allocation2 + $0x368] sm:$0xff]
        %v325 = vld [vmem:[#allocation2 + $0x370] sm:$0xff]
        %v326 = vld [vmem:[#allocation2 + $0x378] sm:$0xff]
        %v327 = vld [vmem:[#allocation2 + $0x380] sm:$0xff]
        %v328 = vld [vmem:[#allocation2 + $0x388] sm:$0xff]
        %v329 = vld [vmem:[#allocation2 + $0x390] sm:$0xff]
        %v330 = vld [vmem:[#allocation2 + $0x398] sm:$0xff]
        %v331 = vld [vmem:[#allocation2 + $0x3a0] sm:$0xff]
        %v332 = vld [vmem:[#allocation2 + $0x3a8] sm:$0xff]
        %v333 = vld [vmem:[#allocation2 + $0x3b0] sm:$0xff]
        %v334 = vld [vmem:[#allocation2 + $0x3b8] sm:$0xff]
        %v335 = vld [vmem:[#allocation2 + $0x3c0] sm:$0xff]
        %v336 = vld [vmem:[#allocation2 + $0x3c8] sm:$0xff]
        %v337 = vld [vmem:[#allocation2 + $0x3d0] sm:$0xff]
        %v338 = vld [vmem:[#allocation2 + $0x3d8] sm:$0xff]
        %v339 = vld [vmem:[#allocation2 + $0x3e0] sm:$0xff]
        %v340 = vld [vmem:[#allocation2 + $0x3e8] sm:$0xff]
        %v341 = vld [vmem:[#allocation2 + $0x3f0] sm:$0xff]
        %v342 = vld [vmem:[#allocation2 + $0x3f8] sm:$0xff]
        %v343 = vld [vmem:[#allocation2 + $0x400] sm:$0xff]
        %v344 = vld [vmem:[#allocation2 + $0x408] sm:$0xff]
        %v345 = vld [vmem:[#allocation2 + $0x410] sm:$0xff]
        %v346 = vld [vmem:[#allocation2 + $0x418] sm:$0xff]
        %v347 = vld [vmem:[#allocation2 + $0x420] sm:$0xff]
        %v348 = vld [vmem:[#allocation2 + $0x428] sm:$0xff]
        %v349 = vld [vmem:[#allocation2 + $0x430] sm:$0xff]
        %v350 = vld [vmem:[#allocation2 + $0x438] sm:$0xff]
        %v351 = vld [vmem:[#allocation2 + $0x440] sm:$0xff]
        %v352 = vld [vmem:[#allocation2 + $0x448] sm:$0xff]
        %v353 = vld [vmem:[#allocation2 + $0x450] sm:$0xff]
        %v354 = vld [vmem:[#allocation2 + $0x458] sm:$0xff]
        %v355 = vld [vmem:[#allocation2 + $0x460] sm:$0xff]
        %v356 = vld [vmem:[#allocation2 + $0x468] sm:$0xff]
        %v357 = vld [vmem:[#allocation2 + $0x470] sm:$0xff]
        %v358 = vld [vmem:[#allocation2 + $0x478] sm:$0xff]
        %v359 = vld [vmem:[#allocation2 + $0x480] sm:$0xff]
        %v360 = vld [vmem:[#allocation2 + $0x488] sm:$0xff]
        %v361 = vld [vmem:[#allocation2 + $0x490] sm:$0xff]
        %v362 = vld [vmem:[#allocation2 + $0x498] sm:$0xff]
        %v363 = vld [vmem:[#allocation2 + $0x4a0] sm:$0xff]
        %v364 = vld [vmem:[#allocation2 + $0x4a8] sm:$0xff]
        %v365 = vld [vmem:[#allocation2 + $0x4b0] sm:$0xff]
        %v366 = vld [vmem:[#allocation2 + $0x4b8] sm:$0xff]
        %v367 = vld [vmem:[#allocation2 + $0x4c0] sm:$0xff]
        %v368 = vld [vmem:[#allocation2 + $0x4c8] sm:$0xff]
        %v369 = vld [vmem:[#allocation2 + $0x4d0] sm:$0xff]
        %v370 = vld [vmem:[#allocation2 + $0x4d8] sm:$0xff]
        %v371 = vld [vmem:[#allocation2 + $0x4e0] sm:$0xff]
        %v372 = vld [vmem:[#allocation2 + $0x4e8] sm:$0xff]
        %v373 = vld [vmem:[#allocation2 + $0x4f0] sm:$0xff]
        %v374 = vld [vmem:[#allocation2 + $0x4f8] sm:$0xff]
        %v375 = vld [vmem:[#allocation2 + $0x500] sm:$0xff]
        %v376 = vld [vmem:[#allocation2 + $0x508] sm:$0xff]
        %v377 = vld [vmem:[#allocation2 + $0x510] sm:$0xff]
        %v378 = vld [vmem:[#allocation2 + $0x518] sm:$0xff]
        %v379 = vld [vmem:[#allocation2 + $0x520] sm:$0xff]
        %v380 = vld [vmem:[#allocation2 + $0x528] sm:$0xff]
        %v381 = vld [vmem:[#allocation2 + $0x530] sm:$0xff]
        %v382 = vld [vmem:[#allocation2 + $0x538] sm:$0xff]
        %v383 = vld [vmem:[#allocation2 + $0x540] sm:$0xff]
        %v384 = vld [vmem:[#allocation2 + $0x548] sm:$0xff]
        %v385 = vld [vmem:[#allocation2 + $0x550] sm:$0xff]
        %v386 = vld [vmem:[#allocation2 + $0x558] sm:$0xff]
        %v387 = vld [vmem:[#allocation2 + $0x560] sm:$0xff]
        %v388 = vld [vmem:[#allocation2 + $0x568] sm:$0xff]
        %v389 = vld [vmem:[#allocation2 + $0x570] sm:$0xff]
        %v390 = vld [vmem:[#allocation2 + $0x578] sm:$0xff]
        %v391 = vld [vmem:[#allocation2 + $0x580] sm:$0xff]
        %v392 = vld [vmem:[#allocation2 + $0x588] sm:$0xff]
        %v393 = vld [vmem:[#allocation2 + $0x590] sm:$0xff]
        %v394 = vld [vmem:[#allocation2 + $0x598] sm:$0xff]
        %v395 = vld [vmem:[#allocation2 + $0x5a0] sm:$0xff]
        %v396 = vld [vmem:[#allocation2 + $0x5a8] sm:$0xff]
        %v397 = vld [vmem:[#allocation2 + $0x5b0] sm:$0xff]
        %v398 = vld [vmem:[#allocation2 + $0x5b8] sm:$0xff]
        %v399 = vld [vmem:[#allocation2 + $0x5c0] sm:$0xff]
        %v400 = vld [vmem:[#allocation2 + $0x5c8] sm:$0xff]
        %v401 = vld [vmem:[#allocation2 + $0x5d0] sm:$0xff]
        %v402 = vld [vmem:[#allocation2 + $0x5d8] sm:$0xff]
        %v403 = vld [vmem:[#allocation2 + $0x5e0] sm:$0xff]
        %v404 = vld [vmem:[#allocation2 + $0x5e8] sm:$0xff]
        %v405 = vld [vmem:[#allocation2 + $0x5f0] sm:$0xff]
        %v406 = vld [vmem:[#allocation2 + $0x5f8] sm:$0xff]
        %v407 = vld [vmem:[#allocation2 + $0x600] sm:$0xff]
        %v408 = vld [vmem:[#allocation2 + $0x608] sm:$0xff]
        %v409 = vld [vmem:[#allocation2 + $0x610] sm:$0xff]
        %v410 = vld [vmem:[#allocation2 + $0x618] sm:$0xff]
        %v411 = vld [vmem:[#allocation2 + $0x620] sm:$0xff]
        %v412 = vld [vmem:[#allocation2 + $0x628] sm:$0xff]
        %v413 = vld [vmem:[#allocation2 + $0x630] sm:$0xff]
        %v414 = vld [vmem:[#allocation2 + $0x638] sm:$0xff]
        %v415 = vld [vmem:[#allocation2 + $0x640] sm:$0xff]
        %v416 = vld [vmem:[#allocation2 + $0x648] sm:$0xff]
        %v417 = vld [vmem:[#allocation2 + $0x650] sm:$0xff]
        %v418 = vld [vmem:[#allocation2 + $0x658] sm:$0xff]
        %v419 = vld [vmem:[#allocation2 + $0x660] sm:$0xff]
        %v420 = vld [vmem:[#allocation2 + $0x668] sm:$0xff]
        %v421 = vld [vmem:[#allocation2 + $0x670] sm:$0xff]
        %v422 = vld [vmem:[#allocation2 + $0x678] sm:$0xff]
        %v423 = vld [vmem:[#allocation2 + $0x680] sm:$0xff]
        %v424 = vld [vmem:[#allocation2 + $0x688] sm:$0xff]
        %v425 = vld [vmem:[#allocation2 + $0x690] sm:$0xff]
        %v426 = vld [vmem:[#allocation2 + $0x698] sm:$0xff]
        %v427 = vld [vmem:[#allocation2 + $0x6a0] sm:$0xff]
        %v428 = vld [vmem:[#allocation2 + $0x6a8] sm:$0xff]
        %v429 = vld [vmem:[#allocation2 + $0x6b0] sm:$0xff]
        %v430 = vld [vmem:[#allocation2 + $0x6b8] sm:$0xff]
        %v431 = vld [vmem:[#allocation2 + $0x6c0] sm:$0xff]
        %v432 = vld [vmem:[#allocation2 + $0x6c8] sm:$0xff]
        %v433 = vld [vmem:[#allocation2 + $0x6d0] sm:$0xff]
        %v434 = vld [vmem:[#allocation2 + $0x6d8] sm:$0xff]
        %v435 = vld [vmem:[#allocation2 + $0x6e0] sm:$0xff]
        %v436 = vld [vmem:[#allocation2 + $0x6e8] sm:$0xff]
        %v437 = vld [vmem:[#allocation2 + $0x6f0] sm:$0xff]
        %v438 = vld [vmem:[#allocation2 + $0x6f8] sm:$0xff]
        %v439 = vld [vmem:[#allocation2 + $0x700] sm:$0xff]
        %v440 = vld [vmem:[#allocation2 + $0x708] sm:$0xff]
        %v441 = vld [vmem:[#allocation2 + $0x710] sm:$0xff]
        %v442 = vld [vmem:[#allocation2 + $0x718] sm:$0xff]
        %v443 = vld [vmem:[#allocation2 + $0x720] sm:$0xff]
        %v444 = vld [vmem:[#allocation2 + $0x728] sm:$0xff]
        %v445 = vld [vmem:[#allocation2 + $0x730] sm:$0xff]
        %v446 = vld [vmem:[#allocation2 + $0x738] sm:$0xff]
        %v447 = vld [vmem:[#allocation2 + $0x740] sm:$0xff]
        %v448 = vld [vmem:[#allocation2 + $0x748] sm:$0xff]
        %v449 = vld [vmem:[#allocation2 + $0x750] sm:$0xff]
        %v450 = vld [vmem:[#allocation2 + $0x758] sm:$0xff]
        %v451 = vld [vmem:[#allocation2 + $0x760] sm:$0xff]
        %v452 = vld [vmem:[#allocation2 + $0x768] sm:$0xff]
        %v453 = vld [vmem:[#allocation2 + $0x770] sm:$0xff]
        %v454 = vld [vmem:[#allocation2 + $0x778] sm:$0xff]
        %v455 = vld [vmem:[#allocation2 + $0x780] sm:$0xff]
        %v456 = vld [vmem:[#allocation2 + $0x788] sm:$0xff]
        %v457 = vld [vmem:[#allocation2 + $0x790] sm:$0xff]
        %v458 = vld [vmem:[#allocation2 + $0x798] sm:$0xff]
        %v459 = vld [vmem:[#allocation2 + $0x7a0] sm:$0xff]
        %v460 = vld [vmem:[#allocation2 + $0x7a8] sm:$0xff]
        %v461 = vld [vmem:[#allocation2 + $0x7b0] sm:$0xff]
        %v462 = vld [vmem:[#allocation2 + $0x7b8] sm:$0xff]
        %v463 = vld [vmem:[#allocation2 + $0x7c0] sm:$0xff]
        %v464 = vld [vmem:[#allocation2 + $0x7c8] sm:$0xff]
        %v465 = vld [vmem:[#allocation2 + $0x7d0] sm:$0xff]
        %v466 = vld [vmem:[#allocation2 + $0x7d8] sm:$0xff]
        %v467 = vld [vmem:[#allocation2 + $0x7e0] sm:$0xff]
        %v468 = vld [vmem:[#allocation2 + $0x7e8] sm:$0xff]
        %v469 = vld [vmem:[#allocation2 + $0x7f0] sm:$0xff]
        %v470 = vld [vmem:[#allocation2 + $0x7f8] sm:$0xff]
        %v472 = vcombine.high %v213, %v213
        %474 = vmatprep.subr.mxu0 %v216
        %475 = vmatpush1.msra.mxu0 %v215
        %476 = vmatprep.subr.mxu0 %v224
        %477 = vmatpush1.msra.mxu0 %v223
        %478 = vmatprep.subr.mxu0 %v232
        %479 = vmatpush1.msra.mxu0 %v231
        %480 = vmatprep.subr.mxu0 %v240
        %481 = vmatpush1.msra.mxu0 %v239
        %482 = vmatprep.subr.mxu0 %v248
        %483 = vmatpush1.msra.mxu0 %v247
        %484 = vmatprep.subr.mxu0 %v256
        %485 = vmatpush1.msra.mxu0 %v255
        %486 = vmatprep.subr.mxu0 %v264
        %487 = vmatpush1.msra.mxu0 %v263
        %488 = vmatprep.subr.mxu0 %v272
        %489 = vmatpush1.msra.mxu0 %v271
        %490 = vmatprep.subr.mxu0 %v280
        %491 = vmatpush1.msra.mxu0 %v279
        %492 = vmatprep.subr.mxu0 %v288
        %493 = vmatpush1.msra.mxu0 %v287
        %494 = vmatprep.subr.mxu0 %v296
        %495 = vmatpush1.msra.mxu0 %v295
        %496 = vmatprep.subr.mxu0 %v304
        %497 = vmatpush1.msra.mxu0 %v303
        %498 = vmatprep.subr.mxu0 %v312
        %499 = vmatpush1.msra.mxu0 %v311
        %500 = vmatprep.subr.mxu0 %v320
        %501 = vmatpush1.msra.mxu0 %v319
        %502 = vmatprep.subr.mxu0 %v328
        %503 = vmatpush1.msra.mxu0 %v327
        %504 = vmatprep.subr.mxu0 %v336
        %505 = vmatpush1.msra.mxu0 %v335
        %506 = vmatprep.subr.mxu0 %v344
        %507 = vmatpush1.msra.mxu0 %v343
        %508 = vmatprep.subr.mxu0 %v352
        %509 = vmatpush1.msra.mxu0 %v351
        %510 = vmatprep.subr.mxu0 %v360
        %511 = vmatpush1.msra.mxu0 %v359
        %512 = vmatprep.subr.mxu0 %v368
        %513 = vmatpush1.msra.mxu0 %v367
        %514 = vmatprep.subr.mxu0 %v376
        %515 = vmatpush1.msra.mxu0 %v375
        %516 = vmatprep.subr.mxu0 %v384
        %517 = vmatpush1.msra.mxu0 %v383
        %518 = vmatprep.subr.mxu0 %v392
        %519 = vmatpush1.msra.mxu0 %v391
        %520 = vmatprep.subr.mxu0 %v400
        %521 = vmatpush1.msra.mxu0 %v399
        %522 = vmatprep.subr.mxu0 %v408
        %523 = vmatpush1.msra.mxu0 %v407
        %524 = vmatprep.subr.mxu0 %v416
        %525 = vmatpush1.msra.mxu0 %v415
        %526 = vmatprep.subr.mxu0 %v424
        %527 = vmatpush1.msra.mxu0 %v423
        %528 = vmatprep.subr.mxu0 %v432
        %529 = vmatpush1.msra.mxu0 %v431
        %530 = vmatprep.subr.mxu0 %v440
        %531 = vmatpush1.msra.mxu0 %v439
        %532 = vmatprep.subr.mxu0 %v448
        %533 = vmatpush1.msra.mxu0 %v447
        %534 = vmatprep.subr.mxu0 %v456
        %535 = vmatpush1.msra.mxu0 %v455
        %536 = vmatprep.subr.mxu0 %v464
        %537 = vmatpush1.msra.mxu0 %v463
        %538 = vmatprep.mubr.f32.mxu0 %v472
        %539 = vmatmul.mubr.f32.gmra.mrb[0].mxu0 %v213
        %v540 = vpop.f32.mrb[0].mxu0
        %v541 = vadd.f32 0.0, %v540
        %v542 = vpop.f32.mrb[0].mxu0
        %v543 = vadd.f32 0.0, %v542
        %544 = vdwg.mxu0
        %545 = vmatprep.subr.mxu0 %v218
        %546 = vmatpush1.msra.mxu0 %v217
        %547 = vmatprep.subr.mxu0 %v226
        %548 = vmatpush1.msra.mxu0 %v225
        %549 = vmatprep.subr.mxu0 %v234
        %550 = vmatpush1.msra.mxu0 %v233
        %551 = vmatprep.subr.mxu0 %v242
        %552 = vmatpush1.msra.mxu0 %v241
        %553 = vmatprep.subr.mxu0 %v250
        %554 = vmatpush1.msra.mxu0 %v249
        %555 = vmatprep.subr.mxu0 %v258
        %556 = vmatpush1.msra.mxu0 %v257
        %557 = vmatprep.subr.mxu0 %v266
        %558 = vmatpush1.msra.mxu0 %v265
        %559 = vmatprep.subr.mxu0 %v274
        %560 = vmatpush1.msra.mxu0 %v273
        %561 = vmatprep.subr.mxu0 %v282
        %562 = vmatpush1.msra.mxu0 %v281
        %563 = vmatprep.subr.mxu0 %v290
        %564 = vmatpush1.msra.mxu0 %v289
        %565 = vmatprep.subr.mxu0 %v298
        %566 = vmatpush1.msra.mxu0 %v297
        %567 = vmatprep.subr.mxu0 %v306
        %568 = vmatpush1.msra.mxu0 %v305
        %569 = vmatprep.subr.mxu0 %v314
        %570 = vmatpush1.msra.mxu0 %v313
        %571 = vmatprep.subr.mxu0 %v322
        %572 = vmatpush1.msra.mxu0 %v321
        %573 = vmatprep.subr.mxu0 %v330
        %574 = vmatpush1.msra.mxu0 %v329
        %575 = vmatprep.subr.mxu0 %v338
        %576 = vmatpush1.msra.mxu0 %v337
        %577 = vmatprep.subr.mxu0 %v346
        %578 = vmatpush1.msra.mxu0 %v345
        %579 = vmatprep.subr.mxu0 %v354
        %580 = vmatpush1.msra.mxu0 %v353
        %581 = vmatprep.subr.mxu0 %v362
        %582 = vmatpush1.msra.mxu0 %v361
        %583 = vmatprep.subr.mxu0 %v370
        %584 = vmatpush1.msra.mxu0 %v369
        %585 = vmatprep.subr.mxu0 %v378
        %586 = vmatpush1.msra.mxu0 %v377
        %587 = vmatprep.subr.mxu0 %v386
        %588 = vmatpush1.msra.mxu0 %v385
        %589 = vmatprep.subr.mxu0 %v394
        %590 = vmatpush1.msra.mxu0 %v393
        %591 = vmatprep.subr.mxu0 %v402
        %592 = vmatpush1.msra.mxu0 %v401
        %593 = vmatprep.subr.mxu0 %v410
        %594 = vmatpush1.msra.mxu0 %v409
        %595 = vmatprep.subr.mxu0 %v418
        %596 = vmatpush1.msra.mxu0 %v417
        %597 = vmatprep.subr.mxu0 %v426
        %598 = vmatpush1.msra.mxu0 %v425
        %599 = vmatprep.subr.mxu0 %v434
        %600 = vmatpush1.msra.mxu0 %v433
        %601 = vmatprep.subr.mxu0 %v442
        %602 = vmatpush1.msra.mxu0 %v441
        %603 = vmatprep.subr.mxu0 %v450
        %604 = vmatpush1.msra.mxu0 %v449
        %605 = vmatprep.subr.mxu0 %v458
        %606 = vmatpush1.msra.mxu0 %v457
        %607 = vmatprep.subr.mxu0 %v466
        %608 = vmatpush1.msra.mxu0 %v465
        %609 = vmatprep.mubr.f32.mxu0 %v472
        %610 = vmatmul.mubr.f32.gmra.mrb[0].mxu0 %v213
        %v611 = vpop.f32.mrb[0].mxu0
        %v612 = vadd.f32 0.0, %v611
        %v613 = vpop.f32.mrb[0].mxu0
        %v614 = vadd.f32 0.0, %v613
        %615 = vdwg.mxu0
        %616 = vmatprep.subr.mxu0 %v220
        %617 = vmatpush1.msra.mxu0 %v219
        %618 = vmatprep.subr.mxu0 %v228
        %619 = vmatpush1.msra.mxu0 %v227
        %620 = vmatprep.subr.mxu0 %v236
        %621 = vmatpush1.msra.mxu0 %v235
        %622 = vmatprep.subr.mxu0 %v244
        %623 = vmatpush1.msra.mxu0 %v243
        %624 = vmatprep.subr.mxu0 %v252
        %625 = vmatpush1.msra.mxu0 %v251
        %626 = vmatprep.subr.mxu0 %v260
        %627 = vmatpush1.msra.mxu0 %v259
        %628 = vmatprep.subr.mxu0 %v268
        %629 = vmatpush1.msra.mxu0 %v267
        %630 = vmatprep.subr.mxu0 %v276
        %631 = vmatpush1.msra.mxu0 %v275
        %632 = vmatprep.subr.mxu0 %v284
        %633 = vmatpush1.msra.mxu0 %v283
        %634 = vmatprep.subr.mxu0 %v292
        %635 = vmatpush1.msra.mxu0 %v291
        %636 = vmatprep.subr.mxu0 %v300
        %637 = vmatpush1.msra.mxu0 %v299
        %638 = vmatprep.subr.mxu0 %v308
        %639 = vmatpush1.msra.mxu0 %v307
        %640 = vmatprep.subr.mxu0 %v316
        %641 = vmatpush1.msra.mxu0 %v315
        %642 = vmatprep.subr.mxu0 %v324
        %643 = vmatpush1.msra.mxu0 %v323
        %644 = vmatprep.subr.mxu0 %v332
        %645 = vmatpush1.msra.mxu0 %v331
        %646 = vmatprep.subr.mxu0 %v340
        %647 = vmatpush1.msra.mxu0 %v339
        %648 = vmatprep.subr.mxu0 %v348
        %649 = vmatpush1.msra.mxu0 %v347
        %650 = vmatprep.subr.mxu0 %v356
        %651 = vmatpush1.msra.mxu0 %v355
        %652 = vmatprep.subr.mxu0 %v364
        %653 = vmatpush1.msra.mxu0 %v363
        %654 = vmatprep.subr.mxu0 %v372
        %655 = vmatpush1.msra.mxu0 %v371
        %656 = vmatprep.subr.mxu0 %v380
        %657 = vmatpush1.msra.mxu0 %v379
        %658 = vmatprep.subr.mxu0 %v388
        %659 = vmatpush1.msra.mxu0 %v387
        %660 = vmatprep.subr.mxu0 %v396
        %661 = vmatpush1.msra.mxu0 %v395
        %662 = vmatprep.subr.mxu0 %v404
        %663 = vmatpush1.msra.mxu0 %v403
        %664 = vmatprep.subr.mxu0 %v412
        %665 = vmatpush1.msra.mxu0 %v411
        %666 = vmatprep.subr.mxu0 %v420
        %667 = vmatpush1.msra.mxu0 %v419
        %668 = vmatprep.subr.mxu0 %v428
        %669 = vmatpush1.msra.mxu0 %v427
        %670 = vmatprep.subr.mxu0 %v436
        %671 = vmatpush1.msra.mxu0 %v435
        %672 = vmatprep.subr.mxu0 %v444
        %673 = vmatpush1.msra.mxu0 %v443
        %674 = vmatprep.subr.mxu0 %v452
        %675 = vmatpush1.msra.mxu0 %v451
        %676 = vmatprep.subr.mxu0 %v460
        %677 = vmatpush1.msra.mxu0 %v459
        %678 = vmatprep.subr.mxu0 %v468
        %679 = vmatpush1.msra.mxu0 %v467
        %680 = vmatprep.mubr.f32.mxu0 %v472
        %681 = vmatmul.mubr.f32.gmra.mrb[0].mxu0 %v213
        %v682 = vpop.f32.mrb[0].mxu0
        %v683 = vadd.f32 0.0, %v682
        %v684 = vpop.f32.mrb[0].mxu0
        %v685 = vadd.f32 0.0, %v684
        %686 = vdwg.mxu0
        %687 = vmatprep.subr.mxu0 %v222
        %688 = vmatpush1.msra.mxu0 %v221
        %689 = vmatprep.subr.mxu0 %v230
        %690 = vmatpush1.msra.mxu0 %v229
        %691 = vmatprep.subr.mxu0 %v238
        %692 = vmatpush1.msra.mxu0 %v237
        %693 = vmatprep.subr.mxu0 %v246
        %694 = vmatpush1.msra.mxu0 %v245
        %695 = vmatprep.subr.mxu0 %v254
        %696 = vmatpush1.msra.mxu0 %v253
        %697 = vmatprep.subr.mxu0 %v262
        %698 = vmatpush1.msra.mxu0 %v261
        %699 = vmatprep.subr.mxu0 %v270
        %700 = vmatpush1.msra.mxu0 %v269
        %701 = vmatprep.subr.mxu0 %v278
        %702 = vmatpush1.msra.mxu0 %v277
        %703 = vmatprep.subr.mxu0 %v286
        %704 = vmatpush1.msra.mxu0 %v285
        %705 = vmatprep.subr.mxu0 %v294
        %706 = vmatpush1.msra.mxu0 %v293
        %707 = vmatprep.subr.mxu0 %v302
        %708 = vmatpush1.msra.mxu0 %v301
        %709 = vmatprep.subr.mxu0 %v310
        %710 = vmatpush1.msra.mxu0 %v309
        %711 = vmatprep.subr.mxu0 %v318
        %712 = vmatpush1.msra.mxu0 %v317
        %713 = vmatprep.subr.mxu0 %v326
        %714 = vmatpush1.msra.mxu0 %v325
        %715 = vmatprep.subr.mxu0 %v334
        %716 = vmatpush1.msra.mxu0 %v333
        %717 = vmatprep.subr.mxu0 %v342
        %718 = vmatpush1.msra.mxu0 %v341
        %719 = vmatprep.subr.mxu0 %v350
        %720 = vmatpush1.msra.mxu0 %v349
        %721 = vmatprep.subr.mxu0 %v358
        %722 = vmatpush1.msra.mxu0 %v357
        %723 = vmatprep.subr.mxu0 %v366
        %724 = vmatpush1.msra.mxu0 %v365
        %725 = vmatprep.subr.mxu0 %v374
        %726 = vmatpush1.msra.mxu0 %v373
        %727 = vmatprep.subr.mxu0 %v382
        %728 = vmatpush1.msra.mxu0 %v381
        %729 = vmatprep.subr.mxu0 %v390
        %730 = vmatpush1.msra.mxu0 %v389
        %731 = vmatprep.subr.mxu0 %v398
        %732 = vmatpush1.msra.mxu0 %v397
        %733 = vmatprep.subr.mxu0 %v406
        %734 = vmatpush1.msra.mxu0 %v405
        %735 = vmatprep.subr.mxu0 %v414
        %736 = vmatpush1.msra.mxu0 %v413
        %737 = vmatprep.subr.mxu0 %v422
        %738 = vmatpush1.msra.mxu0 %v421
        %739 = vmatprep.subr.mxu0 %v430
        %740 = vmatpush1.msra.mxu0 %v429
        %741 = vmatprep.subr.mxu0 %v438
        %742 = vmatpush1.msra.mxu0 %v437
        %743 = vmatprep.subr.mxu0 %v446
        %744 = vmatpush1.msra.mxu0 %v445
        %745 = vmatprep.subr.mxu0 %v454
        %746 = vmatpush1.msra.mxu0 %v453
        %747 = vmatprep.subr.mxu0 %v462
        %748 = vmatpush1.msra.mxu0 %v461
        %749 = vmatprep.subr.mxu0 %v470
        %750 = vmatpush1.msra.mxu0 %v469
        %751 = vmatprep.mubr.f32.mxu0 %v472
        %752 = vmatmul.mubr.f32.gmra.mrb[0].mxu0 %v213
        %v753 = vpop.f32.mrb[0].mxu0
        %v754 = vadd.f32 0.0, %v753
        %v755 = vpop.f32.mrb[0].mxu0
        %v756 = vadd.f32 0.0, %v755
        %757 = vdwg.mxu0
        %v758 = vld [vmem:[%s2] sm:$0xff]
        %760 = vset.pattern.permute.xlu0 0
        %761 = vperm.xlu0 %760, %v758
        %v762 = vpop.permute.xlu0 %761
        %vm764 = vcmask 31744
        %v766 = vsel %vm764, %v214, 0
        %vm768 = vcmask 1043456
        %v770 = vsel %vm768, %v541, 0
        %v773 = vsel %vm768, %v543, 0
        %v776 = vsel %vm768, %v612, 0
        %v779 = vsel %vm768, %v614, 0
        %v782 = vsel %vm768, %v683, 0
        %v785 = vsel %vm768, %v685, 0
        %v788 = vsel %vm768, %v754, 0
        %v791 = vsel %vm768, %v756, 0
        %793 = vmatprep.subr.mxu0 %v773
        %794 = vmatpush1.msra.mxu0 %v770
        %795 = vmatprep.subr.mxu0 0.0
        %796 = vmatpush1.msra.mxu0 0.0
        %797 = vmatprep.subr.mxu0 0.0
        %798 = vmatpush1.msra.mxu0 0.0
        %799 = vmatprep.subr.mxu0 0.0
        %800 = vmatpush1.msra.mxu0 0.0
        %801 = vmatprep.subr.mxu0 0.0
        %802 = vmatpush1.msra.mxu0 0.0
        %803 = vmatprep.subr.mxu0 0.0
        %804 = vmatpush1.msra.mxu0 0.0
        %805 = vmatprep.subr.mxu0 0.0
        %806 = vmatpush1.msra.mxu0 0.0
        %807 = vmatprep.subr.mxu0 0.0
        %808 = vmatpush1.msra.mxu0 0.0
        %809 = vmatprep.subr.mxu0 0.0
        %810 = vmatpush1.msra.mxu0 0.0
        %811 = vmatprep.subr.mxu0 0.0
        %812 = vmatpush1.msra.mxu0 0.0
        %813 = vmatprep.subr.mxu0 0.0
        %814 = vmatpush1.msra.mxu0 0.0
        %815 = vmatprep.subr.mxu0 0.0
        %816 = vmatpush1.msra.mxu0 0.0
        %817 = vmatprep.subr.mxu0 0.0
        %818 = vmatpush1.msra.mxu0 0.0
        %819 = vmatprep.subr.mxu0 0.0
        %820 = vmatpush1.msra.mxu0 0.0
        %821 = vmatprep.subr.mxu0 0.0
        %822 = vmatpush1.msra.mxu0 0.0
        %823 = vmatprep.subr.mxu0 0.0
        %824 = vmatpush1.msra.mxu0 0.0
        %825 = vmatprep.subr.mxu0 0.0
        %826 = vmatpush1.msra.mxu0 0.0
        %827 = vmatprep.subr.mxu0 0.0
        %828 = vmatpush1.msra.mxu0 0.0
        %829 = vmatprep.subr.mxu0 0.0
        %830 = vmatpush1.msra.mxu0 0.0
        %831 = vmatprep.subr.mxu0 0.0
        %832 = vmatpush1.msra.mxu0 0.0
        %833 = vmatprep.subr.mxu0 0.0
        %834 = vmatpush1.msra.mxu0 0.0
        %835 = vmatprep.subr.mxu0 0.0
        %836 = vmatpush1.msra.mxu0 0.0
        %837 = vmatprep.subr.mxu0 0.0
        %838 = vmatpush1.msra.mxu0 0.0
        %839 = vmatprep.subr.mxu0 0.0
        %840 = vmatpush1.msra.mxu0 0.0
        %841 = vmatprep.subr.mxu0 0.0
        %842 = vmatpush1.msra.mxu0 0.0
        %843 = vmatprep.subr.mxu0 0.0
        %844 = vmatpush1.msra.mxu0 0.0
        %845 = vmatprep.subr.mxu0 0.0
        %846 = vmatpush1.msra.mxu0 0.0
        %847 = vmatprep.subr.mxu0 0.0
        %848 = vmatpush1.msra.mxu0 0.0
        %849 = vmatprep.subr.mxu0 0.0
        %850 = vmatpush1.msra.mxu0 0.0
        %851 = vmatprep.subr.mxu0 0.0
        %852 = vmatpush1.msra.mxu0 0.0
        %853 = vmatprep.subr.mxu0 0.0
        %854 = vmatpush1.msra.mxu0 0.0
        %855 = vmatprep.subr.mxu0 0.0
        %856 = vmatpush1.msra.mxu0 0.0
        %857 = vmatprep.mubr.f32.mxu0 0.0
        %858 = vmatmul.mubr.f32.gmra.mrb[0].mxu0 %v766
        %v859 = vpop.f32.mrb[0].mxu0
        %v860 = vadd.f32 %v762, %v859
        %v861 = vpop.f32.mrb[0].mxu0
        %v862 = vadd.f32 %v762, %v861
        %863 = vdwg.mxu0
        %864 = vmatprep.subr.mxu0 %v779
        %865 = vmatpush1.msra.mxu0 %v776
        %866 = vmatprep.subr.mxu0 0.0
        %867 = vmatpush1.msra.mxu0 0.0
        %868 = vmatprep.subr.mxu0 0.0
        %869 = vmatpush1.msra.mxu0 0.0
        %870 = vmatprep.subr.mxu0 0.0
        %871 = vmatpush1.msra.mxu0 0.0
        %872 = vmatprep.subr.mxu0 0.0
        %873 = vmatpush1.msra.mxu0 0.0
        %874 = vmatprep.subr.mxu0 0.0
        %875 = vmatpush1.msra.mxu0 0.0
        %876 = vmatprep.subr.mxu0 0.0
        %877 = vmatpush1.msra.mxu0 0.0
        %878 = vmatprep.subr.mxu0 0.0
        %879 = vmatpush1.msra.mxu0 0.0
        %880 = vmatprep.subr.mxu0 0.0
        %881 = vmatpush1.msra.mxu0 0.0
        %882 = vmatprep.subr.mxu0 0.0
        %883 = vmatpush1.msra.mxu0 0.0
        %884 = vmatprep.subr.mxu0 0.0
        %885 = vmatpush1.msra.mxu0 0.0
        %886 = vmatprep.subr.mxu0 0.0
        %887 = vmatpush1.msra.mxu0 0.0
        %888 = vmatprep.subr.mxu0 0.0
        %889 = vmatpush1.msra.mxu0 0.0
        %890 = vmatprep.subr.mxu0 0.0
        %891 = vmatpush1.msra.mxu0 0.0
        %892 = vmatprep.subr.mxu0 0.0
        %893 = vmatpush1.msra.mxu0 0.0
        %894 = vmatprep.subr.mxu0 0.0
        %895 = vmatpush1.msra.mxu0 0.0
        %896 = vmatprep.subr.mxu0 0.0
        %897 = vmatpush1.msra.mxu0 0.0
        %898 = vmatprep.subr.mxu0 0.0
        %899 = vmatpush1.msra.mxu0 0.0
        %900 = vmatprep.subr.mxu0 0.0
        %901 = vmatpush1.msra.mxu0 0.0
        %902 = vmatprep.subr.mxu0 0.0
        %903 = vmatpush1.msra.mxu0 0.0
        %904 = vmatprep.subr.mxu0 0.0
        %905 = vmatpush1.msra.mxu0 0.0
        %906 = vmatprep.subr.mxu0 0.0
        %907 = vmatpush1.msra.mxu0 0.0
        %908 = vmatprep.subr.mxu0 0.0
        %909 = vmatpush1.msra.mxu0 0.0
        %910 = vmatprep.subr.mxu0 0.0
        %911 = vmatpush1.msra.mxu0 0.0
        %912 = vmatprep.subr.mxu0 0.0
        %913 = vmatpush1.msra.mxu0 0.0
        %914 = vmatprep.subr.mxu0 0.0
        %915 = vmatpush1.msra.mxu0 0.0
        %916 = vmatprep.subr.mxu0 0.0
        %917 = vmatpush1.msra.mxu0 0.0
        %918 = vmatprep.subr.mxu0 0.0
        %919 = vmatpush1.msra.mxu0 0.0
        %920 = vmatprep.subr.mxu0 0.0
        %921 = vmatpush1.msra.mxu0 0.0
        %922 = vmatprep.subr.mxu0 0.0
        %923 = vmatpush1.msra.mxu0 0.0
        %924 = vmatprep.subr.mxu0 0.0
        %925 = vmatpush1.msra.mxu0 0.0
        %926 = vmatprep.subr.mxu0 0.0
        %927 = vmatpush1.msra.mxu0 0.0
        %928 = vmatprep.mubr.f32.mxu0 0.0
        %929 = vmatmul.mubr.f32.gmra.mrb[0].mxu0 %v766
        %v930 = vpop.f32.mrb[0].mxu0
        %v931 = vadd.f32 %v762, %v930
        %v932 = vpop.f32.mrb[0].mxu0
        %v933 = vadd.f32 %v762, %v932
        %934 = vdwg.mxu0
        %935 = vmatprep.subr.mxu0 %v785
        %936 = vmatpush1.msra.mxu0 %v782
        %937 = vmatprep.subr.mxu0 0.0
        %938 = vmatpush1.msra.mxu0 0.0
        %939 = vmatprep.subr.mxu0 0.0
        %940 = vmatpush1.msra.mxu0 0.0
        %941 = vmatprep.subr.mxu0 0.0
        %942 = vmatpush1.msra.mxu0 0.0
        %943 = vmatprep.subr.mxu0 0.0
        %944 = vmatpush1.msra.mxu0 0.0
        %945 = vmatprep.subr.mxu0 0.0
        %946 = vmatpush1.msra.mxu0 0.0
        %947 = vmatprep.subr.mxu0 0.0
        %948 = vmatpush1.msra.mxu0 0.0
        %949 = vmatprep.subr.mxu0 0.0
        %950 = vmatpush1.msra.mxu0 0.0
        %951 = vmatprep.subr.mxu0 0.0
        %952 = vmatpush1.msra.mxu0 0.0
        %953 = vmatprep.subr.mxu0 0.0
        %954 = vmatpush1.msra.mxu0 0.0
        %955 = vmatprep.subr.mxu0 0.0
        %956 = vmatpush1.msra.mxu0 0.0
        %957 = vmatprep.subr.mxu0 0.0
        %958 = vmatpush1.msra.mxu0 0.0
        %959 = vmatprep.subr.mxu0 0.0
        %960 = vmatpush1.msra.mxu0 0.0
        %961 = vmatprep.subr.mxu0 0.0
        %962 = vmatpush1.msra.mxu0 0.0
        %963 = vmatprep.subr.mxu0 0.0
        %964 = vmatpush1.msra.mxu0 0.0
        %965 = vmatprep.subr.mxu0 0.0
        %966 = vmatpush1.msra.mxu0 0.0
        %967 = vmatprep.subr.mxu0 0.0
        %968 = vmatpush1.msra.mxu0 0.0
        %969 = vmatprep.subr.mxu0 0.0
        %970 = vmatpush1.msra.mxu0 0.0
        %971 = vmatprep.subr.mxu0 0.0
        %972 = vmatpush1.msra.mxu0 0.0
        %973 = vmatprep.subr.mxu0 0.0
        %974 = vmatpush1.msra.mxu0 0.0
        %975 = vmatprep.subr.mxu0 0.0
        %976 = vmatpush1.msra.mxu0 0.0
        %977 = vmatprep.subr.mxu0 0.0
        %978 = vmatpush1.msra.mxu0 0.0
        %979 = vmatprep.subr.mxu0 0.0
        %980 = vmatpush1.msra.mxu0 0.0
        %981 = vmatprep.subr.mxu0 0.0
        %982 = vmatpush1.msra.mxu0 0.0
        %983 = vmatprep.subr.mxu0 0.0
        %984 = vmatpush1.msra.mxu0 0.0
        %985 = vmatprep.subr.mxu0 0.0
        %986 = vmatpush1.msra.mxu0 0.0
        %987 = vmatprep.subr.mxu0 0.0
        %988 = vmatpush1.msra.mxu0 0.0
        %989 = vmatprep.subr.mxu0 0.0
        %990 = vmatpush1.msra.mxu0 0.0
        %991 = vmatprep.subr.mxu0 0.0
        %992 = vmatpush1.msra.mxu0 0.0
        %993 = vmatprep.subr.mxu0 0.0
        %994 = vmatpush1.msra.mxu0 0.0
        %995 = vmatprep.subr.mxu0 0.0
        %996 = vmatpush1.msra.mxu0 0.0
        %997 = vmatprep.subr.mxu0 0.0
        %998 = vmatpush1.msra.mxu0 0.0
        %999 = vmatprep.mubr.f32.mxu0 0.0
        %1000 = vmatmul.mubr.f32.gmra.mrb[0].mxu0 %v766
        %v1001 = vpop.f32.mrb[0].mxu0
        %v1002 = vadd.f32 %v762, %v1001
        %v1003 = vpop.f32.mrb[0].mxu0
        %v1004 = vadd.f32 %v762, %v1003
        %1005 = vdwg.mxu0
        %1006 = vmatprep.subr.mxu0 %v791
        %1007 = vmatpush1.msra.mxu0 %v788
        %1008 = vmatprep.subr.mxu0 0.0
        %1009 = vmatpush1.msra.mxu0 0.0
        %1010 = vmatprep.subr.mxu0 0.0
        %1011 = vmatpush1.msra.mxu0 0.0
        %1012 = vmatprep.subr.mxu0 0.0
        %1013 = vmatpush1.msra.mxu0 0.0
        %1014 = vmatprep.subr.mxu0 0.0
        %1015 = vmatpush1.msra.mxu0 0.0
        %1016 = vmatprep.subr.mxu0 0.0
        %1017 = vmatpush1.msra.mxu0 0.0
        %1018 = vmatprep.subr.mxu0 0.0
        %1019 = vmatpush1.msra.mxu0 0.0
        %1020 = vmatprep.subr.mxu0 0.0
        %1021 = vmatpush1.msra.mxu0 0.0
        %1022 = vmatprep.subr.mxu0 0.0
        %1023 = vmatpush1.msra.mxu0 0.0
        %1024 = vmatprep.subr.mxu0 0.0
        %1025 = vmatpush1.msra.mxu0 0.0
        %1026 = vmatprep.subr.mxu0 0.0
        %1027 = vmatpush1.msra.mxu0 0.0
        %1028 = vmatprep.subr.mxu0 0.0
        %1029 = vmatpush1.msra.mxu0 0.0
        %1030 = vmatprep.subr.mxu0 0.0
        %1031 = vmatpush1.msra.mxu0 0.0
        %1032 = vmatprep.subr.mxu0 0.0
        %1033 = vmatpush1.msra.mxu0 0.0
        %1034 = vmatprep.subr.mxu0 0.0
        %1035 = vmatpush1.msra.mxu0 0.0
        %1036 = vmatprep.subr.mxu0 0.0
        %1037 = vmatpush1.msra.mxu0 0.0
        %1038 = vmatprep.subr.mxu0 0.0
        %1039 = vmatpush1.msra.mxu0 0.0
        %1040 = vmatprep.subr.mxu0 0.0
        %1041 = vmatpush1.msra.mxu0 0.0
        %1042 = vmatprep.subr.mxu0 0.0
        %1043 = vmatpush1.msra.mxu0 0.0
        %1044 = vmatprep.subr.mxu0 0.0
        %1045 = vmatpush1.msra.mxu0 0.0
        %1046 = vmatprep.subr.mxu0 0.0
        %1047 = vmatpush1.msra.mxu0 0.0
        %1048 = vmatprep.subr.mxu0 0.0
        %1049 = vmatpush1.msra.mxu0 0.0
        %1050 = vmatprep.subr.mxu0 0.0
        %1051 = vmatpush1.msra.mxu0 0.0
        %1052 = vmatprep.subr.mxu0 0.0
        %1053 = vmatpush1.msra.mxu0 0.0
        %1054 = vmatprep.subr.mxu0 0.0
        %1055 = vmatpush1.msra.mxu0 0.0
        %1056 = vmatprep.subr.mxu0 0.0
        %1057 = vmatpush1.msra.mxu0 0.0
        %1058 = vmatprep.subr.mxu0 0.0
        %1059 = vmatpush1.msra.mxu0 0.0
        %1060 = vmatprep.subr.mxu0 0.0
        %1061 = vmatpush1.msra.mxu0 0.0
        %1062 = vmatprep.subr.mxu0 0.0
        %1063 = vmatpush1.msra.mxu0 0.0
        %1064 = vmatprep.subr.mxu0 0.0
        %1065 = vmatpush1.msra.mxu0 0.0
        %1066 = vmatprep.subr.mxu0 0.0
        %1067 = vmatpush1.msra.mxu0 0.0
        %1068 = vmatprep.subr.mxu0 0.0
        %1069 = vmatpush1.msra.mxu0 0.0
        %1070 = vmatprep.mubr.f32.mxu0 0.0
        %1071 = vmatmul.mubr.f32.gmra.mrb[0].mxu0 %v766
        %v1072 = vpop.f32.mrb[0].mxu0
        %v1073 = vadd.f32 %v762, %v1072
        %v1074 = vpop.f32.mrb[0].mxu0
        %v1075 = vadd.f32 %v762, %v1074
        %1076 = vdwg.mxu0
        %1077 = vst [vmem:[%s212] sm:$0xff] %v860
        %1078 = vst [vmem:[%s212 + $0x8] sm:$0xff] %v862
        %1079 = vst [vmem:[%s212 + $0x10] sm:$0xff] %v931
        %1080 = vst [vmem:[%s212 + $0x18] sm:$0xff] %v933
        %1081 = vst [vmem:[%s212 + $0x20] sm:$0xff] %v1002
        %1082 = vst [vmem:[%s212 + $0x28] sm:$0xff] %v1004
        %1083 = vst [vmem:[%s212 + $0x30] sm:$0xff] %v1073
        %1084 = vst [vmem:[%s212 + $0x38] sm:$0xff] %v1075
        %p1085 = scmp.lt.s32.totalorder %s16, 1
        %s1086 = scalar_select %p1085, %s16, 1
        %s1087 = smul.addr %s1086, 8
        %s1088 = smul.addr %s1087, 8
        %s1089 = scalar_lea.vmem %s4, %s1088
        // Predicated region
        $region41: #{transition_block.1} parent=35 // pred_check
          %p1090 = pneg %p123
        $region42: #{transition_block.1} parent=35 // pred_check_branch
          %1092 = sbr.rel (%p1090) target = $region44
        $region43: #{transition_block.1} parent=35 // pred_region
          _
        $region44: #{transition_block.1} parent=35 // pred_fallthru
          _
      $region36: #{transition_block.1} parent=5 // pred_fallthru
        _
      %p1093 = scmp.le.s32.totalorder 2, %s11
      // Predicated region
      $region45: #{transition_block.1} parent=5 // pred_check
        %p1094 = pneg %p1093
      $region46: #{transition_block.1} parent=5 // pred_check_branch
        %1096 = sbr.rel (%p1094) target = $region48
      $region47: #{transition_block.1} parent=5 // pred_region
        %s1097 = ssub.s32 %s11, 2
        // Predicated region
        $region49: #{transition_block.1} parent=47 // pred_check
          %p1098 = pneg %p129
        $region50: #{transition_block.1} parent=47 // pred_check_branch
          %1100 = sbr.rel (%p1098) target = $region52
        $region51: #{transition_block.1} parent=47 // pred_region
          %p1101 = scmp.lt.s32.totalorder %s17, 1
          %s1102 = scalar_select %p1101, %s17, 1
          %s1103 = smul.addr %s1102, 8
          %s1104 = smul.addr %s1103, 8
          %s1105 = scalar_lea.vmem %s4, %s1104
        $region52: #{transition_block.1} parent=47 // pred_fallthru
          _
      $region48: #{transition_block.1} parent=5 // pred_fallthru
        _
    $region6: #{transition_block.1} parent=1 // loop_footer
      %s15 = sadd.s32 1, %s11
    $region7: #{transition_block.1} parent=1 // loop_footer_branch
      %10 = sbr.rel target = $region3
    $region8: #{transition_block.1} parent=1 // loop_exit
      _
    %1106 = vsyncpa [#allocation3], 1
    %s1107 = scalar_lea.sflag [#allocation3], 1
    %1108 = vsyncpa %s1107, 1

</llo_original>
